<compile_context>
chip_gen: v7x
topology: tpu7x:2x2x1
jax: 0.10.0
libtpu: 0.0.40
codegen_flags: <defaults>
</compile_context>

<pallas_src>
import jax
import jax.numpy as jnp
from jax.experimental import pallas as pl
from jax.experimental.pallas import tpu as pltpu

# ---- module hyper-parameters (small, consistent with the module) ----
BATCH = 8
IN_DIM = 16
HID = [32, 32]
OUT_DIM = 4                      # model output width is 2 * OUT_DIM
OUT_W = 2 * OUT_DIM

H0, H1 = HID
B_TOT = H0 + H1 + OUT_W          # packed-bias width

# CDropout defaults: rate=0.5 -> p=0.5 -> logit_p = -log(1/p - 1) = 0.0
LOGIT_P = 0.0
TEMPERATURE = 0.1
INV_TEMP = 1.0 / TEMPERATURE


def bnn_kernel(x_ref, w0_ref, w1_ref, wo_ref, b_ref, ln_ref, out_ref):
    """One batch-tile of the whole MLP; weights/biases fully resident in VMEM."""
    x = x_ref[...]
    b = b_ref[...]                     # (1, H0+H1+OUT_W)  packed biases
    ln = ln_ref[...]                   # (tb, H0+H1)       packed logit(u) noise

    # Concrete-dropout gates for both layers in one shot (single EUP sigmoid).
    gate = jax.nn.sigmoid((LOGIT_P + ln) * INV_TEMP)

    # fc_0 + drop_0
    h0 = jnp.dot(x, w0_ref[...], preferred_element_type=jnp.float32) + b[:, :H0]
    h0 = h0 * gate[:, :H0]

    # fc_1 + drop_1
    h1 = jnp.dot(h0, w1_ref[...], preferred_element_type=jnp.float32) + b[:, H0:H0 + H1]
    h1 = h1 * gate[:, H0:]

    # single nonlin before the output layer (exactly as in bayesian_model)
    h1 = jnp.maximum(h1, 0.0)

    # fc_out -> (tb, 2*OUT_DIM), tanh only on the log_std half, single store
    out = jnp.dot(h1, wo_ref[...], preferred_element_type=jnp.float32) + b[:, H0 + H1:]
    col = jax.lax.broadcasted_iota(jnp.int32, out.shape, dimension=1)
    out_ref[...] = jnp.where(col >= OUT_DIM, jnp.tanh(out), out)


@jax.jit
def bnn_forward(x, w0t, w1t, wot, b_packed, logit_noise):
    B = x.shape[0]
    tb = min(B, 128)                  # batch tile; scales to MC-sample batching
    assert B % tb == 0, "batch must be a multiple of the batch tile"
    grid = (B // tb,)

    out = pl.pallas_call(
        bnn_kernel,
        out_shape=jax.ShapeDtypeStruct((B, OUT_W), jnp.float32),
        grid=grid,
        in_specs=[
            pl.BlockSpec((tb, IN_DIM), lambda i: (i, 0)),       # x tile
            pl.BlockSpec((IN_DIM, H0), lambda i: (0, 0)),       # W0^T (resident)
            pl.BlockSpec((H0, H1), lambda i: (0, 0)),           # W1^T (resident)
            pl.BlockSpec((H1, OUT_W), lambda i: (0, 0)),        # Wout^T (resident)
            pl.BlockSpec((1, B_TOT), lambda i: (0, 0)),         # packed biases
            pl.BlockSpec((tb, H0 + H1), lambda i: (i, 0)),      # packed logit-noise
        ],
        out_specs=pl.BlockSpec((tb, OUT_W), lambda i: (i, 0)),  # single lane-dense out
        compiler_params=pltpu.CompilerParams(
            dimension_semantics=("parallel",)),
    )(x, w0t, w1t, wot, b_packed, logit_noise)

    # mean / log_std split done in plain JAX (free layout op), as in forward()
    return out[:, :OUT_DIM], out[:, OUT_DIM:]


def bnn_reference(x, w0t, w1t, wot, b_packed, logit_noise):
    """Pure-JAX reference of the same forward pass."""
    b0 = b_packed[:, :H0]
    b1 = b_packed[:, H0:H0 + H1]
    bo = b_packed[:, H0 + H1:]
    gate = jax.nn.sigmoid((LOGIT_P + logit_noise) * INV_TEMP)
    h0 = (x @ w0t + b0) * gate[:, :H0]
    h1 = (h0 @ w1t + b1) * gate[:, H0:]
    h1 = jnp.maximum(h1, 0.0)
    out = h1 @ wot + bo
    return out[:, :OUT_DIM], jnp.tanh(out[:, OUT_DIM:])


def init_params(key):
    """Deterministic init matching the module's shapes:
    weights ~ kaiming-normal (std = sqrt(2/fan_in)), biases ~ U(-1, 1).
    Weights are pre-transposed to (in, out); biases packed into one row."""
    ks = jax.random.split(key, 6)
    dims = [IN_DIM] + HID
    wts, bs = [], []
    for i, (din, dout) in enumerate(zip(dims[:-1], dims[1:])):
        w = jax.random.normal(ks[2 * i], (dout, din), jnp.float32) * jnp.sqrt(2.0 / din)
        b = jax.random.uniform(ks[2 * i + 1], (dout,), jnp.float32, -1.0, 1.0)
        wts.append(w.T)
        bs.append(b)
    w = jax.random.normal(ks[4], (OUT_W, HID[-1]), jnp.float32) * jnp.sqrt(2.0 / HID[-1])
    b = jax.random.uniform(ks[5], (OUT_W,), jnp.float32, -1.0, 1.0)
    wts.append(w.T)
    bs.append(b)
    b_packed = jnp.concatenate(bs).reshape(1, B_TOT)
    return wts[0], wts[1], wts[2], b_packed


if __name__ == "__main__":
    key = jax.random.PRNGKey(0)
    k_x, k_p, k_u = jax.random.split(key, 3)

    x = jax.random.normal(k_x, (BATCH, IN_DIM), jnp.float32)
    w0t, w1t, wot, b_packed = init_params(k_p)

    # Concrete-dropout uniform noise for both layers, concatenated, with the
    # logit precomputed at generation time (matches torch.rand_like semantics;
    # kept in the open interval so log(u)/log(1-u) are finite).
    eps = 1e-6
    u = jax.random.uniform(k_u, (BATCH, H0 + H1), jnp.float32, eps, 1.0 - eps)
    logit_noise = jnp.log(u) - jnp.log1p(-u)

    mean, log_std = bnn_forward(x, w0t, w1t, wot, b_packed, logit_noise)
    jax.block_until_ready((mean, log_std))

    ref_mean, ref_log_std = bnn_reference(x, w0t, w1t, wot, b_packed, logit_noise)
    assert jnp.allclose(mean, ref_mean, atol=1e-4, rtol=1e-4)
    assert jnp.allclose(log_std, ref_log_std, atol=1e-4, rtol=1e-4)

    print("KERNEL_OK")
</pallas_src>

<mosaic_0001>
module attributes {stable_mosaic.version = 11 : i64} {
  func.func @bnn_kernel(%arg0: i32, %arg1: memref<8x16xf32, #tpu.memory_space<vmem>>, %arg2: memref<16x32xf32, #tpu.memory_space<vmem>>, %arg3: memref<32x32xf32, #tpu.memory_space<vmem>>, %arg4: memref<32x8xf32, #tpu.memory_space<vmem>>, %arg5: memref<1x72xf32, #tpu.memory_space<vmem>>, %arg6: memref<8x64xf32, #tpu.memory_space<vmem>>, %arg7: memref<8x8xf32, #tpu.memory_space<vmem>>) attributes {dimension_semantics = [#tpu.dimension_semantics<parallel>], iteration_bounds = array<i64: 1>, scalar_prefetch = 0 : i64, scratch_operands = 0 : i64, tpu.core_type = #tpu.core_type<tc>, window_params = [{transform_indices = @transform_0, window_bounds = array<i64: 8, 16>}, {pipeline_mode = #tpu.pipeline_mode<synchronous>, transform_indices = @transform_1, window_bounds = array<i64: 16, 32>}, {pipeline_mode = #tpu.pipeline_mode<synchronous>, transform_indices = @transform_2, window_bounds = array<i64: 32, 32>}, {pipeline_mode = #tpu.pipeline_mode<synchronous>, transform_indices = @transform_3, window_bounds = array<i64: 32, 8>}, {pipeline_mode = #tpu.pipeline_mode<synchronous>, transform_indices = @transform_4, window_bounds = array<i64: 1, 72>}, {transform_indices = @transform_5, window_bounds = array<i64: 8, 64>}, {transform_indices = @transform_6, window_bounds = array<i64: 8, 8>}]} {
    %c0 = arith.constant 0 : index
    %c0_0 = arith.constant 0 : index
    %0 = vector.load %arg1[%c0, %c0_0] : memref<8x16xf32, #tpu.memory_space<vmem>>, vector<8x16xf32>
    %c0_1 = arith.constant 0 : index
    %c0_2 = arith.constant 0 : index
    %1 = vector.load %arg5[%c0_1, %c0_2] : memref<1x72xf32, #tpu.memory_space<vmem>>, vector<1x72xf32>
    %c0_3 = arith.constant 0 : index
    %c0_4 = arith.constant 0 : index
    %2 = vector.load %arg6[%c0_3, %c0_4] : memref<8x64xf32, #tpu.memory_space<vmem>>, vector<8x64xf32>
    %cst = arith.constant 0.000000e+00 : f32
    %3 = vector.broadcast %cst : f32 to vector<8x64xf32>
    %4 = arith.addf %3, %2 : vector<8x64xf32>
    %cst_5 = arith.constant 1.000000e+01 : f32
    %5 = vector.broadcast %cst_5 : f32 to vector<8x64xf32>
    %6 = arith.mulf %4, %5 : vector<8x64xf32>
    %7 = arith.negf %6 : vector<8x64xf32>
    %8 = math.exp %7 : vector<8x64xf32>
    %cst_6 = arith.constant 1.000000e+00 : f32
    %9 = vector.broadcast %cst_6 : f32 to vector<8x64xf32>
    %10 = arith.addf %9, %8 : vector<8x64xf32>
    %11 = arith.divf %9, %10 : vector<8x64xf32>
    %c0_7 = arith.constant 0 : index
    %c0_8 = arith.constant 0 : index
    %12 = vector.load %arg2[%c0_7, %c0_8] : memref<16x32xf32, #tpu.memory_space<vmem>>, vector<16x32xf32>
    %cst_9 = arith.constant dense<0.000000e+00> : vector<8x32xf32>
    %13 = tpu.matmul %0, %12, %cst_9 {dimension_numbers = #tpu.dot_dimension_numbers<[1], [0], [0], [1], [0, 0, 1, 1], [], []>} : vector<8x16xf32>, vector<16x32xf32>, vector<8x32xf32> -> vector<8x32xf32>
    %14 = vector.extract_strided_slice %1 {offsets = [0, 0], sizes = [1, 32], strides = [1, 1]} : vector<1x72xf32> to vector<1x32xf32>
    %15 = vector.broadcast %14 : vector<1x32xf32> to vector<8x32xf32>
    %16 = arith.addf %13, %15 : vector<8x32xf32>
    %17 = vector.extract_strided_slice %11 {offsets = [0, 0], sizes = [8, 32], strides = [1, 1]} : vector<8x64xf32> to vector<8x32xf32>
    %18 = arith.mulf %16, %17 : vector<8x32xf32>
    %c0_10 = arith.constant 0 : index
    %c0_11 = arith.constant 0 : index
    %19 = vector.load %arg3[%c0_10, %c0_11] : memref<32x32xf32, #tpu.memory_space<vmem>>, vector<32x32xf32>
    %cst_12 = arith.constant dense<0.000000e+00> : vector<8x32xf32>
    %20 = tpu.matmul %18, %19, %cst_12 {dimension_numbers = #tpu.dot_dimension_numbers<[1], [0], [0], [1], [0, 0, 1, 1], [], []>} : vector<8x32xf32>, vector<32x32xf32>, vector<8x32xf32> -> vector<8x32xf32>
    %21 = vector.extract_strided_slice %1 {offsets = [0, 32], sizes = [1, 32], strides = [1, 1]} : vector<1x72xf32> to vector<1x32xf32>
    %22 = vector.broadcast %21 : vector<1x32xf32> to vector<8x32xf32>
    %23 = arith.addf %20, %22 : vector<8x32xf32>
    %24 = vector.extract_strided_slice %11 {offsets = [0, 32], sizes = [8, 32], strides = [1, 1]} : vector<8x64xf32> to vector<8x32xf32>
    %25 = arith.mulf %23, %24 : vector<8x32xf32>
    %cst_13 = arith.constant 0.000000e+00 : f32
    %26 = vector.broadcast %cst_13 : f32 to vector<8x32xf32>
    %27 = arith.maximumf %25, %26 : vector<8x32xf32>
    %c0_14 = arith.constant 0 : index
    %c0_15 = arith.constant 0 : index
    %28 = vector.load %arg4[%c0_14, %c0_15] : memref<32x8xf32, #tpu.memory_space<vmem>>, vector<32x8xf32>
    %cst_16 = arith.constant dense<0.000000e+00> : vector<8x8xf32>
    %29 = tpu.matmul %27, %28, %cst_16 {dimension_numbers = #tpu.dot_dimension_numbers<[1], [0], [0], [1], [0, 0, 1, 1], [], []>} : vector<8x32xf32>, vector<32x8xf32>, vector<8x8xf32> -> vector<8x8xf32>
    %30 = vector.extract_strided_slice %1 {offsets = [0, 64], sizes = [1, 8], strides = [1, 1]} : vector<1x72xf32> to vector<1x8xf32>
    %31 = vector.broadcast %30 : vector<1x8xf32> to vector<8x8xf32>
    %32 = arith.addf %29, %31 : vector<8x8xf32>
    %33 = tpu.iota {dimensions = array<i32: 1>} : vector<8x8xi32>
    %c4_i32 = arith.constant 4 : i32
    %34 = vector.broadcast %c4_i32 : i32 to vector<8x8xi32>
    %35 = arith.cmpi sge, %33, %34 : vector<8x8xi32>
    %36 = math.tanh %32 : vector<8x8xf32>
    %37 = arith.select %35, %36, %32 : vector<8x8xi1>, vector<8x8xf32>
    %c0_17 = arith.constant 0 : index
    %c0_18 = arith.constant 0 : index
    %38 = vector.load %arg7[%c0_17, %c0_18] : memref<8x8xf32, #tpu.memory_space<vmem>>, vector<8x8xf32>
    tpu.vector_store %arg7[%c0_17, %c0_18], %37 {strides = array<i32>} : memref<8x8xf32, #tpu.memory_space<vmem>>, vector<8x8xf32>,
    return
  }
  func.func @transform_0(%arg0: i32) -> (i32, i32) {
    %c0_i32 = arith.constant 0 : i32
    %c0_i32_0 = arith.constant 0 : i32
    return %arg0, %c0_i32 : i32, i32
  }
  func.func @transform_1(%arg0: i32) -> (i32, i32) {
    %c0_i32 = arith.constant 0 : i32
    %c0_i32_0 = arith.constant 0 : i32
    %c0_i32_1 = arith.constant 0 : i32
    return %c0_i32, %c0_i32_0 : i32, i32
  }
  func.func @transform_2(%arg0: i32) -> (i32, i32) {
    %c0_i32 = arith.constant 0 : i32
    %c0_i32_0 = arith.constant 0 : i32
    %c0_i32_1 = arith.constant 0 : i32
    return %c0_i32, %c0_i32_0 : i32, i32
  }
  func.func @transform_3(%arg0: i32) -> (i32, i32) {
    %c0_i32 = arith.constant 0 : i32
    %c0_i32_0 = arith.constant 0 : i32
    %c0_i32_1 = arith.constant 0 : i32
    return %c0_i32, %c0_i32_0 : i32, i32
  }
  func.func @transform_4(%arg0: i32) -> (i32, i32) {
    %c0_i32 = arith.constant 0 : i32
    %c0_i32_0 = arith.constant 0 : i32
    %c0_i32_1 = arith.constant 0 : i32
    return %c0_i32, %c0_i32_0 : i32, i32
  }
  func.func @transform_5(%arg0: i32) -> (i32, i32) {
    %c0_i32 = arith.constant 0 : i32
    %c0_i32_0 = arith.constant 0 : i32
    return %arg0, %c0_i32 : i32, i32
  }
  func.func @transform_6(%arg0: i32) -> (i32, i32) {
    %c0_i32 = arith.constant 0 : i32
    %c0_i32_0 = arith.constant 0 : i32
    return %arg0, %c0_i32 : i32, i32
  }
}

</mosaic_0001>

<llo_original>
// kernel: bnn_forward.1
$region0: #{bnn_forward.1}
  #allocation0 [shape = 'u32[]', space=smem, size = 0x4, offset = 0x4, fixed_abs, tag = 'smem constant byte address 0x4 - core index']
  #allocation1 [shape = 'u32[144,128]{1,0:T(1,128)}', space=vmem, size = 0x12000, scoped, tag = 'internal scratch']
  %s0 = inlined_call_operand.vmem [shape: f32[8,16], index: 0, kind: input, shape index: {}]
  %s1 = inlined_call_operand.hbm [shape: f32[16,32], index: 1, kind: input, shape index: {}]
  %s2 = inlined_call_operand.vmem [shape: f32[32,32], index: 2, kind: input, shape index: {}]
  %s3 = inlined_call_operand.vmem [shape: f32[32,8], index: 3, kind: input, shape index: {}]
  %s4 = inlined_call_operand.vmem [shape: f32[1,72], index: 4, kind: input, shape index: {}]
  %s5 = inlined_call_operand.vmem [shape: f32[8,64], index: 5, kind: input, shape index: {}]
  %s6 = inlined_call_operand.vmem [shape: f32[8,8], index: 6, kind: output, shape index: {}]
  %s7 = sld [smem:[#allocation0]]
  $region38: #{bnn_forward.1} parent=0
    _
  %s9 = ssub.s32 1, %s7
  %s10 = scalar_select 0, %s9, %s7
  $region1: #{bnn_forward.1} parent=0
    #allocation2 [shape = 'u8[8192]{0}', space=vmem, size = 0x2000, scoped, tag = 'input window, operand 1, single buffered']
    #allocation3 [shape = 's32[1]{0}', space=sflag, size = 0x4, scoped, tag = 'scoped memory for bnn_forward.1']
    %11 = vsyncpa [#allocation3], 0
    // Predicated region
    $region2: #{bnn_forward.1} parent=1 // pred_check
      _
    $region3: #{bnn_forward.1} parent=1 // pred_check_branch
      %13 = sbr.rel (0) target = $region5
    $region4: #{bnn_forward.1} parent=1 // pred_region
      _
    $region5: #{bnn_forward.1} parent=1 // pred_fallthru
      _
    // Predicated region
    $region6: #{bnn_forward.1} parent=1 // pred_check
      _
    $region7: #{bnn_forward.1} parent=1 // pred_check_branch
      %15 = sbr.rel (0) target = $region9
    $region8: #{bnn_forward.1} parent=1 // pred_region
      %s17 = ssub.s32 256, 256
      %18 = vsyncadd [#allocation3], %s17
      %s19 = sshll.u32 [#allocation2], 4
      %s20 = int_to_ptr.vmem [resolvable:$true] %s19
      %25 = dma.hbm_to_vmem [thread:$0]  %s1, 256, %s20, [#allocation3], 128, 128, 8
    $region9: #{bnn_forward.1} parent=1 // pred_fallthru
      _
    // Predicated region
    $region10: #{bnn_forward.1} parent=1 // pred_check
      _
    $region11: #{bnn_forward.1} parent=1 // pred_check_branch
      %27 = sbr.rel (0) target = $region13
    $region12: #{bnn_forward.1} parent=1 // pred_region
      _
    $region13: #{bnn_forward.1} parent=1 // pred_fallthru
      _
    // Predicated region
    $region14: #{bnn_forward.1} parent=1 // pred_check
      _
    $region15: #{bnn_forward.1} parent=1 // pred_check_branch
      %29 = sbr.rel (0) target = $region17
    $region16: #{bnn_forward.1} parent=1 // pred_region
      _
    $region17: #{bnn_forward.1} parent=1 // pred_fallthru
      _
    // Predicated region
    $region18: #{bnn_forward.1} parent=1 // pred_check
      _
    $region19: #{bnn_forward.1} parent=1 // pred_check_branch
      %31 = sbr.rel (0) target = $region21
    $region20: #{bnn_forward.1} parent=1 // pred_region
      _
    $region21: #{bnn_forward.1} parent=1 // pred_fallthru
      _
    // Predicated region
    $region22: #{bnn_forward.1} parent=1 // pred_check
      _
    $region23: #{bnn_forward.1} parent=1 // pred_check_branch
      %33 = sbr.rel (0) target = $region25
    $region24: #{bnn_forward.1} parent=1 // pred_region
      _
    $region25: #{bnn_forward.1} parent=1 // pred_fallthru
      _
    // Predicated region
    $region26: #{bnn_forward.1} parent=1 // pred_check
      _
    $region27: #{bnn_forward.1} parent=1 // pred_check_branch
      %35 = sbr.rel (0) target = $region29
    $region28: #{bnn_forward.1} parent=1 // pred_region
      %36 = dma.done [#allocation3], 256
    $region29: #{bnn_forward.1} parent=1 // pred_fallthru
      _
    %v37 = vld [vmem:[%s0] sm:$0xff]
    %v38 = vld [vmem:[%s4] sm:$0x1]
    %v39 = vld [vmem:[%s5] sm:$0xff]
    %v40 = vadd.f32 %v39, 0.0
    %v41 = vmul.f32 %v40, 10.0
    %v42 = vxor.u32 %v41, 2147483648
    %v43 = vmul.f32 %v42, 1.442695
    %v44 = vpow.pop %v43
    %v45 = vadd.f32 %v44, 1.0
    %v46 = vrcp.pop %v45
    %v47 = vmul.f32 1.0, %v46
    %v48 = vld [vmem:[#allocation2] sm:$0xff]
    %v49 = vld [vmem:[#allocation2 + $0x8] sm:$0xff]
    %v51 = vlaneseq
    %v52 = vshrl.u32 %v51, 7
    %v53 = vsub.s32 0, %v52
    %v54 = vrot.slane %v38, %v53
    %vm56 = vcmask 130048
    %v58 = vsel %vm56, %v37, 0
    %60 = vmatprep.subr.mxu0 0.0
    %61 = vmatpush1.msra.mxu0 %v48
    %62 = vmatprep.subr.mxu0 0.0
    %63 = vmatpush1.msra.mxu0 %v49
    %64 = vmatprep.subr.mxu0 0.0
    %65 = vmatpush1.msra.mxu0 0.0
    %66 = vmatprep.subr.mxu0 0.0
    %67 = vmatpush1.msra.mxu0 0.0
    %68 = vmatprep.subr.mxu0 0.0
    %69 = vmatpush1.msra.mxu0 0.0
    %70 = vmatprep.subr.mxu0 0.0
    %71 = vmatpush1.msra.mxu0 0.0
    %72 = vmatprep.subr.mxu0 0.0
    %73 = vmatpush1.msra.mxu0 0.0
    %74 = vmatprep.subr.mxu0 0.0
    %75 = vmatpush1.msra.mxu0 0.0
    %76 = vmatprep.subr.mxu0 0.0
    %77 = vmatpush1.msra.mxu0 0.0
    %78 = vmatprep.subr.mxu0 0.0
    %79 = vmatpush1.msra.mxu0 0.0
    %80 = vmatprep.subr.mxu0 0.0
    %81 = vmatpush1.msra.mxu0 0.0
    %82 = vmatprep.subr.mxu0 0.0
    %83 = vmatpush1.msra.mxu0 0.0
    %84 = vmatprep.subr.mxu0 0.0
    %85 = vmatpush1.msra.mxu0 0.0
    %86 = vmatprep.subr.mxu0 0.0
    %87 = vmatpush1.msra.mxu0 0.0
    %88 = vmatprep.subr.mxu0 0.0
    %89 = vmatpush1.msra.mxu0 0.0
    %90 = vmatprep.subr.mxu0 0.0
    %91 = vmatpush1.msra.mxu0 0.0
    %92 = vmatprep.subr.mxu0 0.0
    %93 = vmatpush1.msra.mxu0 0.0
    %94 = vmatprep.subr.mxu0 0.0
    %95 = vmatpush1.msra.mxu0 0.0
    %96 = vmatprep.subr.mxu0 0.0
    %97 = vmatpush1.msra.mxu0 0.0
    %98 = vmatprep.subr.mxu0 0.0
    %99 = vmatpush1.msra.mxu0 0.0
    %100 = vmatprep.subr.mxu0 0.0
    %101 = vmatpush1.msra.mxu0 0.0
    %102 = vmatprep.subr.mxu0 0.0
    %103 = vmatpush1.msra.mxu0 0.0
    %104 = vmatprep.subr.mxu0 0.0
    %105 = vmatpush1.msra.mxu0 0.0
    %106 = vmatprep.subr.mxu0 0.0
    %107 = vmatpush1.msra.mxu0 0.0
    %108 = vmatprep.subr.mxu0 0.0
    %109 = vmatpush1.msra.mxu0 0.0
    %110 = vmatprep.subr.mxu0 0.0
    %111 = vmatpush1.msra.mxu0 0.0
    %112 = vmatprep.subr.mxu0 0.0
    %113 = vmatpush1.msra.mxu0 0.0
    %114 = vmatprep.subr.mxu0 0.0
    %115 = vmatpush1.msra.mxu0 0.0
    %116 = vmatprep.subr.mxu0 0.0
    %117 = vmatpush1.msra.mxu0 0.0
    %118 = vmatprep.subr.mxu0 0.0
    %119 = vmatpush1.msra.mxu0 0.0
    %120 = vmatprep.subr.mxu0 0.0
    %121 = vmatpush1.msra.mxu0 0.0
    %122 = vmatprep.subr.mxu0 0.0
    %123 = vmatpush1.msra.mxu0 0.0
    %124 = vmatprep.mubr.f32.mxu0 0.0
    %125 = vmatmul.mubr.f32.gmra.mrb[0].mxu0 %v58
    %v126 = vpop.f32.mrb[0].mxu0
    %v127 = vadd.f32 %v54, %v126
    %v128 = vpop.f32.mrb[0].mxu0
    %129 = vdwg.mxu0
    %v130 = vmul.f32 %v127, %v47
    %v131 = vld [vmem:[%s2] sm:$0xff]
    %v132 = vld [vmem:[%s2 + $0x8] sm:$0xff]
    %v133 = vld [vmem:[%s2 + $0x10] sm:$0xff]
    %v134 = vld [vmem:[%s2 + $0x18] sm:$0xff]
    %135 = vrot.lane.b32.xlu0 %v54, 96
    %v136 = vpop.permute.xlu0 %135
    %vm138 = vcmask 261120
    %v140 = vsel %vm138, %v130, 0
    %142 = vmatprep.subr.mxu0 0.0
    %143 = vmatpush1.msra.mxu0 %v131
    %144 = vmatprep.subr.mxu0 0.0
    %145 = vmatpush1.msra.mxu0 %v132
    %146 = vmatprep.subr.mxu0 0.0
    %147 = vmatpush1.msra.mxu0 %v133
    %148 = vmatprep.subr.mxu0 0.0
    %149 = vmatpush1.msra.mxu0 %v134
    %150 = vmatprep.subr.mxu0 0.0
    %151 = vmatpush1.msra.mxu0 0.0
    %152 = vmatprep.subr.mxu0 0.0
    %153 = vmatpush1.msra.mxu0 0.0
    %154 = vmatprep.subr.mxu0 0.0
    %155 = vmatpush1.msra.mxu0 0.0
    %156 = vmatprep.subr.mxu0 0.0
    %157 = vmatpush1.msra.mxu0 0.0
    %158 = vmatprep.subr.mxu0 0.0
    %159 = vmatpush1.msra.mxu0 0.0
    %160 = vmatprep.subr.mxu0 0.0
    %161 = vmatpush1.msra.mxu0 0.0
    %162 = vmatprep.subr.mxu0 0.0
    %163 = vmatpush1.msra.mxu0 0.0
    %164 = vmatprep.subr.mxu0 0.0
    %165 = vmatpush1.msra.mxu0 0.0
    %166 = vmatprep.subr.mxu0 0.0
    %167 = vmatpush1.msra.mxu0 0.0
    %168 = vmatprep.subr.mxu0 0.0
    %169 = vmatpush1.msra.mxu0 0.0
    %170 = vmatprep.subr.mxu0 0.0
    %171 = vmatpush1.msra.mxu0 0.0
    %172 = vmatprep.subr.mxu0 0.0
    %173 = vmatpush1.msra.mxu0 0.0
    %174 = vmatprep.subr.mxu0 0.0
    %175 = vmatpush1.msra.mxu0 0.0
    %176 = vmatprep.subr.mxu0 0.0
    %177 = vmatpush1.msra.mxu0 0.0
    %178 = vmatprep.subr.mxu0 0.0
    %179 = vmatpush1.msra.mxu0 0.0
    %180 = vmatprep.subr.mxu0 0.0
    %181 = vmatpush1.msra.mxu0 0.0
    %182 = vmatprep.subr.mxu0 0.0
    %183 = vmatpush1.msra.mxu0 0.0
    %184 = vmatprep.subr.mxu0 0.0
    %185 = vmatpush1.msra.mxu0 0.0
    %186 = vmatprep.subr.mxu0 0.0
    %187 = vmatpush1.msra.mxu0 0.0
    %188 = vmatprep.subr.mxu0 0.0
    %189 = vmatpush1.msra.mxu0 0.0
    %190 = vmatprep.subr.mxu0 0.0
    %191 = vmatpush1.msra.mxu0 0.0
    %192 = vmatprep.subr.mxu0 0.0
    %193 = vmatpush1.msra.mxu0 0.0
    %194 = vmatprep.subr.mxu0 0.0
    %195 = vmatpush1.msra.mxu0 0.0
    %196 = vmatprep.subr.mxu0 0.0
    %197 = vmatpush1.msra.mxu0 0.0
    %198 = vmatprep.subr.mxu0 0.0
    %199 = vmatpush1.msra.mxu0 0.0
    %200 = vmatprep.subr.mxu0 0.0
    %201 = vmatpush1.msra.mxu0 0.0
    %202 = vmatprep.subr.mxu0 0.0
    %203 = vmatpush1.msra.mxu0 0.0
    %204 = vmatprep.subr.mxu0 0.0
    %205 = vmatpush1.msra.mxu0 0.0
    %206 = vmatprep.mubr.f32.mxu0 0.0
    %207 = vmatmul.mubr.f32.gmra.mrb[0].mxu0 %v140
    %v208 = vpop.f32.mrb[0].mxu0
    %v209 = vadd.f32 %v136, %v208
    %v210 = vpop.f32.mrb[0].mxu0
    %211 = vdwg.mxu0
    %213 = vrot.lane.b32.xlu0 %v47, 96
    %v214 = vpop.permute.xlu0 %213
    %v216 = vmul.f32 %v209, %v214
    %v217 = vmax.f32 %v216, 0.0
    %v218 = vld [vmem:[%s3] sm:$0xff]
    %v219 = vld [vmem:[%s3 + $0x8] sm:$0xff]
    %v220 = vld [vmem:[%s3 + $0x10] sm:$0xff]
    %v221 = vld [vmem:[%s3 + $0x18] sm:$0xff]
    %222 = vrot.lane.b32.xlu0 %v54, 64
    %v223 = vpop.permute.xlu0 %222
    %v226 = vsel %vm138, %v217, 0
    %228 = vmatprep.subr.mxu0 0.0
    %229 = vmatpush1.msra.mxu0 %v218
    %230 = vmatprep.subr.mxu0 0.0
    %231 = vmatpush1.msra.mxu0 %v219
    %232 = vmatprep.subr.mxu0 0.0
    %233 = vmatpush1.msra.mxu0 %v220
    %234 = vmatprep.subr.mxu0 0.0
    %235 = vmatpush1.msra.mxu0 %v221
    %236 = vmatprep.subr.mxu0 0.0
    %237 = vmatpush1.msra.mxu0 0.0
    %238 = vmatprep.subr.mxu0 0.0
    %239 = vmatpush1.msra.mxu0 0.0
    %240 = vmatprep.subr.mxu0 0.0
    %241 = vmatpush1.msra.mxu0 0.0
    %242 = vmatprep.subr.mxu0 0.0
    %243 = vmatpush1.msra.mxu0 0.0
    %244 = vmatprep.subr.mxu0 0.0
    %245 = vmatpush1.msra.mxu0 0.0
    %246 = vmatprep.subr.mxu0 0.0
    %247 = vmatpush1.msra.mxu0 0.0
    %248 = vmatprep.subr.mxu0 0.0
    %249 = vmatpush1.msra.mxu0 0.0
    %250 = vmatprep.subr.mxu0 0.0
    %251 = vmatpush1.msra.mxu0 0.0
    %252 = vmatprep.subr.mxu0 0.0
    %253 = vmatpush1.msra.mxu0 0.0
    %254 = vmatprep.subr.mxu0 0.0
    %255 = vmatpush1.msra.mxu0 0.0
    %256 = vmatprep.subr.mxu0 0.0
    %257 = vmatpush1.msra.mxu0 0.0
    %258 = vmatprep.subr.mxu0 0.0
    %259 = vmatpush1.msra.mxu0 0.0
    %260 = vmatprep.subr.mxu0 0.0
    %261 = vmatpush1.msra.mxu0 0.0
    %262 = vmatprep.subr.mxu0 0.0
    %263 = vmatpush1.msra.mxu0 0.0
    %264 = vmatprep.subr.mxu0 0.0
    %265 = vmatpush1.msra.mxu0 0.0
    %266 = vmatprep.subr.mxu0 0.0
    %267 = vmatpush1.msra.mxu0 0.0
    %268 = vmatprep.subr.mxu0 0.0
    %269 = vmatpush1.msra.mxu0 0.0
    %270 = vmatprep.subr.mxu0 0.0
    %271 = vmatpush1.msra.mxu0 0.0
    %272 = vmatprep.subr.mxu0 0.0
    %273 = vmatpush1.msra.mxu0 0.0
    %274 = vmatprep.subr.mxu0 0.0
    %275 = vmatpush1.msra.mxu0 0.0
    %276 = vmatprep.subr.mxu0 0.0
    %277 = vmatpush1.msra.mxu0 0.0
    %278 = vmatprep.subr.mxu0 0.0
    %279 = vmatpush1.msra.mxu0 0.0
    %280 = vmatprep.subr.mxu0 0.0
    %281 = vmatpush1.msra.mxu0 0.0
    %282 = vmatprep.subr.mxu0 0.0
    %283 = vmatpush1.msra.mxu0 0.0
    %284 = vmatprep.subr.mxu0 0.0
    %285 = vmatpush1.msra.mxu0 0.0
    %286 = vmatprep.subr.mxu0 0.0
    %287 = vmatpush1.msra.mxu0 0.0
    %288 = vmatprep.subr.mxu0 0.0
    %289 = vmatpush1.msra.mxu0 0.0
    %290 = vmatprep.subr.mxu0 0.0
    %291 = vmatpush1.msra.mxu0 0.0
    %292 = vmatprep.mubr.f32.mxu0 0.0
    %293 = vmatmul.mubr.f32.gmra.mrb[0].mxu0 %v226
    %v294 = vpop.f32.mrb[0].mxu0
    %v295 = vadd.f32 %v223, %v294
    %v296 = vpop.f32.mrb[0].mxu0
    %297 = vdwg.mxu0
    %v298 = vlaneseq
    %v299 = vand.u32 %v298, 127
    %vm300 = vcmp.ge.s32.totalorder %v299, 4
    %v301 = vtanh.pop %v295
    %v302 = vsel %vm300, %v301, %v295
    %vm303 = vcmask 64512
    %304 = vst.msk [vmem:[%s6] sm:$0xff] %vm303, %v302
    // Predicated region
    $region30: #{bnn_forward.1} parent=1 // pred_check
      _
    $region31: #{bnn_forward.1} parent=1 // pred_check_branch
      %306 = sbr.rel (0) target = $region33
    $region32: #{bnn_forward.1} parent=1 // pred_region
      _
    $region33: #{bnn_forward.1} parent=1 // pred_fallthru
      _
    // Predicated region
    $region34: #{bnn_forward.1} parent=1 // pred_check
      _
    $region35: #{bnn_forward.1} parent=1 // pred_check_branch
      %308 = sbr.rel (0) target = $region37
    $region36: #{bnn_forward.1} parent=1 // pred_region
      _
    $region37: #{bnn_forward.1} parent=1 // pred_fallthru
      _
    %309 = vsyncpa [#allocation3], 1

</llo_original>
